<compile_context>
chip_gen: v7x
topology: tpu7x:2x2x1
jax: 0.10.0
libtpu: 0.0.40
codegen_flags: <defaults>
</compile_context>

<pallas_src>
import math

import jax
import jax.numpy as jnp
from jax import lax
from jax.experimental import pallas as pl
from jax.experimental.pallas import tpu as pltpu


def _round_up(a, b):
    return (a + b - 1) // b * b


def _classifier_kernel(x_ref, wexp_ref, b_ref, o_ref):
    # x_ref    : (TM, L*H)  row tile of flattened features (native dtype)
    # wexp_ref : (L, L*H)   block-diagonal expanded weight: row l holds
    #                       weight[l, :] in columns [l*H, (l+1)*H), else 0
    # b_ref    : (L, 1)     bias (f32)
    # o_ref    : (L, TM)    lane-dense transposed output tile
    out = lax.dot_general(
        wexp_ref[...], x_ref[...],
        dimension_numbers=(((1,), (1,)), ((), ())),   # contract the L*H axis
        preferred_element_type=jnp.float32,
        precision=lax.Precision.HIGHEST,
    )                                                  # (L, TM) f32
    o_ref[...] = (out + b_ref[...]).astype(o_ref.dtype)


def classifier_forward(features, weight, bias, *, tm=2048,
                       lane_major_output=False):
    """features: (..., L, H); weight: (L, H); bias: (L,).

    Returns (..., L) (or the raw (L, M) slab if lane_major_output=True).
    """
    *lead, L, H = features.shape
    M = math.prod(lead) if lead else 1
    dtype = features.dtype

    # Flatten to (M, L*H): rows are contiguous in HBM -> efficient DMA slabs.
    # No dtype cast, no padding copy: reshape of a contiguous array is free.
    x2 = features.reshape(M, L * H)

    # Row-tile size: multiple of 128, clamped so (a) small M gets one 128-row
    # tile and (b) large M yields >= 2 grid steps (v7x megacore sharding).
    desired = _round_up(max(tm, 128), 128)
    half = _round_up(pl.cdiv(M, 2), 128) if M > 128 else 128
    tm_eff = max(128, min(desired, half))
    grid_m = pl.cdiv(M, tm_eff)
    m_pad = grid_m * tm_eff          # output buffer only; input is NOT padded

    # Block-diagonal expanded weight (L, L*H), cast to the features dtype so
    # the HBM read side stays narrow; accumulation is still f32.
    # (L^2*H work -- trivial at L=3; hoist/precompute once for large L.)
    w = jnp.asarray(weight, dtype)
    eye = jnp.eye(L, dtype=dtype)
    wexp = (eye[:, :, None] * w[None, :, :]).reshape(L, L * H)
    b2 = jnp.asarray(bias, jnp.float32).reshape(L, 1)

    itemsize = jnp.dtype(dtype).itemsize
    bytes_accessed = (M * L * H * itemsize          # x read
                      + L * L * H * itemsize        # expanded weight read
                      + L * 4                       # bias read
                      + L * m_pad * itemsize)       # output write

    out_lm = pl.pallas_call(
        _classifier_kernel,
        out_shape=jax.ShapeDtypeStruct((L, m_pad), dtype),
        grid=(grid_m,),
        in_specs=[
            pl.BlockSpec((tm_eff, L * H), lambda i: (i, 0)),     # x row tile
            pl.BlockSpec((L, L * H), lambda i: (0, 0)),          # expanded W
            pl.BlockSpec((L, 1), lambda i: (0, 0)),              # bias
        ],
        out_specs=pl.BlockSpec((L, tm_eff), lambda i: (0, i)),   # (L, M) slab
        compiler_params=pltpu.CompilerParams(
            dimension_semantics=("parallel",)),
        cost_estimate=pl.CostEstimate(
            flops=2 * M * L * H,
            bytes_accessed=bytes_accessed,
            transcendentals=0),
    )(x2, wexp, b2)

    out_lm = out_lm[:, :M]
    if lane_major_output:
        return out_lm                                 # (L, M), no transpose
    # Cheap layout plumbing back to the module's (..., L) output.
    return out_lm.T.reshape(*lead, L)


def _reference(features, weight, bias):
    # Exact semantics of Classifier.forward: mul, sum(-1), + bias.
    return jnp.sum(features * weight, axis=-1) + bias


if __name__ == "__main__":
    # Small shapes consistent with the module: num_labels=3 (LOC/PER/ORG).
    B, S, L, H = 2, 8, 3, 32
    key = jax.random.PRNGKey(0)
    k_feat, k_w, k_b, k_feat2 = jax.random.split(key, 4)

    features = jax.random.normal(k_feat, (B, S, L, H), dtype=jnp.float32)

    # kaiming_uniform_(a=sqrt(5)) bound = sqrt(6 / ((1 + a^2) * fan_in)),
    # bias uniform(-1/sqrt(fan_in), 1/sqrt(fan_in)) as in torch reset_parameters.
    bound_w = math.sqrt(6.0 / ((1.0 + 5.0) * H))
    weight = jax.random.uniform(k_w, (L, H), minval=-bound_w, maxval=bound_w,
                                dtype=jnp.float32)
    bound_b = 1.0 / math.sqrt(H)
    bias = jax.random.uniform(k_b, (L,), minval=-bound_b, maxval=bound_b,
                              dtype=jnp.float32)

    out = classifier_forward(features, weight, bias)
    out = jax.block_until_ready(out)
    ref = _reference(features, weight, bias)
    assert out.shape == (B, S, L)
    assert jnp.allclose(out, ref, atol=1e-4, rtol=1e-4), "mismatch vs reference"

    # Second check: multi-tile grid with a ragged final row tile (M = 300,
    # tm_eff = 256 -> 2 grid steps, last tile reads 44 valid rows).
    B2, S2 = 5, 60
    features2 = jax.random.normal(k_feat2, (B2, S2, L, H), dtype=jnp.float32)
    out2 = classifier_forward(features2, weight, bias, tm=256)
    out2 = jax.block_until_ready(out2)
    ref2 = _reference(features2, weight, bias)
    assert out2.shape == (B2, S2, L)
    assert jnp.allclose(out2, ref2, atol=1e-4, rtol=1e-4), "ragged-tile mismatch"

    print("KERNEL_OK")
</pallas_src>

<mosaic_0001>
module attributes {stable_mosaic.version = 11 : i64} {
  func.func @_classifier_kernel(%arg0: i32, %arg1: memref<128x96xf32, #tpu.memory_space<vmem>>, %arg2: memref<3x96xf32, #tpu.memory_space<vmem>>, %arg3: memref<3x1xf32, #tpu.memory_space<vmem>>, %arg4: memref<3x128xf32, #tpu.memory_space<vmem>>) attributes {dimension_semantics = [#tpu.dimension_semantics<parallel>], iteration_bounds = array<i64: 1>, scalar_prefetch = 0 : i64, scratch_operands = 0 : i64, tpu.core_type = #tpu.core_type<tc>, window_params = [{transform_indices = @transform_0, window_bounds = array<i64: 128, 96>}, {pipeline_mode = #tpu.pipeline_mode<synchronous>, transform_indices = @transform_1, window_bounds = array<i64: 3, 96>}, {pipeline_mode = #tpu.pipeline_mode<synchronous>, transform_indices = @transform_2, window_bounds = array<i64: 3, 1>}, {transform_indices = @transform_3, window_bounds = array<i64: 3, 128>}]} {
    %c0 = arith.constant 0 : index
    %c0_0 = arith.constant 0 : index
    %0 = vector.load %arg2[%c0, %c0_0] : memref<3x96xf32, #tpu.memory_space<vmem>>, vector<3x96xf32>
    %c0_1 = arith.constant 0 : index
    %c0_2 = arith.constant 0 : index
    %1 = vector.load %arg1[%c0_1, %c0_2] : memref<128x96xf32, #tpu.memory_space<vmem>>, vector<128x96xf32>
    %cst = arith.constant dense<0.000000e+00> : vector<3x128xf32>
    %2 = tpu.matmul %0, %1, %cst {dimension_numbers = #tpu.dot_dimension_numbers<[1], [1], [0], [0], [0, 0, 1, 0], [], []>, precision = #tpu.contract_precision<fp32>} : vector<3x96xf32>, vector<128x96xf32>, vector<3x128xf32> -> vector<3x128xf32>
    %c0_3 = arith.constant 0 : index
    %c0_4 = arith.constant 0 : index
    %3 = vector.load %arg3[%c0_3, %c0_4] : memref<3x1xf32, #tpu.memory_space<vmem>>, vector<3x1xf32>
    %4 = vector.broadcast %3 : vector<3x1xf32> to vector<3x128xf32>
    %5 = arith.addf %2, %4 : vector<3x128xf32>
    %c0_5 = arith.constant 0 : index
    %c0_6 = arith.constant 0 : index
    %6 = vector.load %arg4[%c0_5, %c0_6] : memref<3x128xf32, #tpu.memory_space<vmem>>, vector<3x128xf32>
    tpu.vector_store %arg4[%c0_5, %c0_6], %5 {strides = array<i32>} : memref<3x128xf32, #tpu.memory_space<vmem>>, vector<3x128xf32>,
    return
  }
  func.func @transform_0(%arg0: i32) -> (i32, i32) {
    %c0_i32 = arith.constant 0 : i32
    %c0_i32_0 = arith.constant 0 : i32
    return %arg0, %c0_i32 : i32, i32
  }
  func.func @transform_1(%arg0: i32) -> (i32, i32) {
    %c0_i32 = arith.constant 0 : i32
    %c0_i32_0 = arith.constant 0 : i32
    %c0_i32_1 = arith.constant 0 : i32
    return %c0_i32, %c0_i32_0 : i32, i32
  }
  func.func @transform_2(%arg0: i32) -> (i32, i32) {
    %c0_i32 = arith.constant 0 : i32
    %c0_i32_0 = arith.constant 0 : i32
    %c0_i32_1 = arith.constant 0 : i32
    return %c0_i32, %c0_i32_0 : i32, i32
  }
  func.func @transform_3(%arg0: i32) -> (i32, i32) {
    %c0_i32 = arith.constant 0 : i32
    %c0_i32_0 = arith.constant 0 : i32
    return %c0_i32, %arg0 : i32, i32
  }
}

</mosaic_0001>

<llo_original>
// kernel: tpu_custom_call.1
$region0: #{tpu_custom_call.1}
  #allocation0 [shape = 'u32[]', space=smem, size = 0x4, offset = 0x4, fixed_abs, tag = 'smem constant byte address 0x4 - core index']
  #allocation1 [shape = 'u32[144,128]{1,0:T(1,128)}', space=vmem, size = 0x12000, scoped, tag = 'internal scratch']
  %s0 = inlined_call_operand.hbm [shape: f32[16,96], index: 0, kind: input, shape index: {}]
  %s1 = inlined_call_operand.vmem [shape: f32[3,96], index: 1, kind: input, shape index: {}]
  %s2 = inlined_call_operand.vmem [shape: f32[3,1], index: 2, kind: input, shape index: {}]
  %s3 = inlined_call_operand.hbm [shape: f32[3,128], index: 3, kind: output, shape index: {}]
  %s4 = sld [smem:[#allocation0]]
  $region26: #{tpu_custom_call.1} parent=0
    _
  %s6 = ssub.s32 1, %s4
  %s7 = scalar_select 0, %s6, %s4
  $region1: #{tpu_custom_call.1} parent=0
    #allocation2 [shape = 'u8[65536]{0}', space=vmem, size = 0x10000, scoped, tag = 'input window, operand 0, single buffered']
    #allocation3 [shape = 's32[1]{0}', space=sflag, size = 0x4, scoped, tag = 'scoped memory for tpu_custom_call.1']
    #allocation4 [shape = 's32[1]{0}', space=sflag, size = 0x4, scoped, tag = 'scoped memory for tpu_custom_call.1']
    #allocation5 [shape = 'u8[2048]{0}', space=vmem, size = 0x800, scoped, tag = 'output window, operand 0, single buffered']
    %8 = vsyncpa [#allocation3], 0
    %9 = vsyncpa [#allocation4], 0
    // Predicated region
    $region2: #{tpu_custom_call.1} parent=1 // pred_check
      _
    $region3: #{tpu_custom_call.1} parent=1 // pred_check_branch
      %11 = sbr.rel (0) target = $region5
    $region4: #{tpu_custom_call.1} parent=1 // pred_region
      %s13 = ssub.s32 2048, 256
      %14 = vsyncadd [#allocation3], %s13
      %s15 = sshll.u32 [#allocation2], 4
      %s16 = int_to_ptr.vmem [resolvable:$true] %s15
      %21 = dma.hbm_to_vmem [thread:$0]  %s0, 256, %s16, [#allocation3], 128, 128, 8
    $region5: #{tpu_custom_call.1} parent=1 // pred_fallthru
      _
    // Predicated region
    $region6: #{tpu_custom_call.1} parent=1 // pred_check
      _
    $region7: #{tpu_custom_call.1} parent=1 // pred_check_branch
      %23 = sbr.rel (0) target = $region9
    $region8: #{tpu_custom_call.1} parent=1 // pred_region
      _
    $region9: #{tpu_custom_call.1} parent=1 // pred_fallthru
      _
    // Predicated region
    $region10: #{tpu_custom_call.1} parent=1 // pred_check
      _
    $region11: #{tpu_custom_call.1} parent=1 // pred_check_branch
      %25 = sbr.rel (0) target = $region13
    $region12: #{tpu_custom_call.1} parent=1 // pred_region
      _
    $region13: #{tpu_custom_call.1} parent=1 // pred_fallthru
      _
    // Predicated region
    $region14: #{tpu_custom_call.1} parent=1 // pred_check
      _
    $region15: #{tpu_custom_call.1} parent=1 // pred_check_branch
      %27 = sbr.rel (0) target = $region17
    $region16: #{tpu_custom_call.1} parent=1 // pred_region
      %28 = dma.done [#allocation3], 2048
    $region17: #{tpu_custom_call.1} parent=1 // pred_fallthru
      _
    %v29 = vld [vmem:[%s1] sm:$0x7]
    %v30 = vld [vmem:[#allocation2] sm:$0xff]
    %v31 = vld [vmem:[#allocation2 + $0x8] sm:$0xff]
    %v32 = vld [vmem:[#allocation2 + $0x10] sm:$0xff]
    %v33 = vld [vmem:[#allocation2 + $0x18] sm:$0xff]
    %v34 = vld [vmem:[#allocation2 + $0x20] sm:$0xff]
    %v35 = vld [vmem:[#allocation2 + $0x28] sm:$0xff]
    %v36 = vld [vmem:[#allocation2 + $0x30] sm:$0xff]
    %v37 = vld [vmem:[#allocation2 + $0x38] sm:$0xff]
    %v38 = vld [vmem:[#allocation2 + $0x40] sm:$0xff]
    %v39 = vld [vmem:[#allocation2 + $0x48] sm:$0xff]
    %v40 = vld [vmem:[#allocation2 + $0x50] sm:$0xff]
    %v41 = vld [vmem:[#allocation2 + $0x58] sm:$0xff]
    %v42 = vld [vmem:[#allocation2 + $0x60] sm:$0xff]
    %v43 = vld [vmem:[#allocation2 + $0x68] sm:$0xff]
    %v44 = vld [vmem:[#allocation2 + $0x70] sm:$0xff]
    %v45 = vld [vmem:[#allocation2 + $0x78] sm:$0xff]
    %v46 = vld [vmem:[%s2] sm:$0x7]
    %48 = vset.pattern.permute.xlu0 0
    %49 = vperm.xlu0 %48, %v46
    %v50 = vpop.permute.xlu0 %49
    %vm52 = vcmask 785408
    %v54 = vsel %vm52, %v29, 0
    %v57 = vsel %vm52, %v30, 0
    %v60 = vsel %vm52, %v31, 0
    %v63 = vsel %vm52, %v32, 0
    %v66 = vsel %vm52, %v33, 0
    %v69 = vsel %vm52, %v34, 0
    %v72 = vsel %vm52, %v35, 0
    %v75 = vsel %vm52, %v36, 0
    %v78 = vsel %vm52, %v37, 0
    %v81 = vsel %vm52, %v38, 0
    %v84 = vsel %vm52, %v39, 0
    %v87 = vsel %vm52, %v40, 0
    %v90 = vsel %vm52, %v41, 0
    %v93 = vsel %vm52, %v42, 0
    %v96 = vsel %vm52, %v43, 0
    %v99 = vsel %vm52, %v44, 0
    %v102 = vsel %vm52, %v45, 0
    %104 = vmatprep.subr.mxu0 0.0
    %v105 = vand.u32 %v57, 4294901760
    %106 = vmatpush1.xpose.msra.mxu0 %v105
    %107 = vmatprep.subr.mxu0 0.0
    %v108 = vand.u32 %v60, 4294901760
    %109 = vmatpush1.xpose.msra.mxu0 %v108
    %110 = vmatprep.subr.mxu0 0.0
    %v111 = vand.u32 %v63, 4294901760
    %112 = vmatpush1.xpose.msra.mxu0 %v111
    %113 = vmatprep.subr.mxu0 0.0
    %v114 = vand.u32 %v66, 4294901760
    %115 = vmatpush1.xpose.msra.mxu0 %v114
    %116 = vmatprep.subr.mxu0 0.0
    %v117 = vand.u32 %v69, 4294901760
    %118 = vmatpush1.xpose.msra.mxu0 %v117
    %119 = vmatprep.subr.mxu0 0.0
    %v120 = vand.u32 %v72, 4294901760
    %121 = vmatpush1.xpose.msra.mxu0 %v120
    %122 = vmatprep.subr.mxu0 0.0
    %v123 = vand.u32 %v75, 4294901760
    %124 = vmatpush1.xpose.msra.mxu0 %v123
    %125 = vmatprep.subr.mxu0 0.0
    %v126 = vand.u32 %v78, 4294901760
    %127 = vmatpush1.xpose.msra.mxu0 %v126
    %128 = vmatprep.subr.mxu0 0.0
    %v129 = vand.u32 %v81, 4294901760
    %130 = vmatpush1.xpose.msra.mxu0 %v129
    %131 = vmatprep.subr.mxu0 0.0
    %v132 = vand.u32 %v84, 4294901760
    %133 = vmatpush1.xpose.msra.mxu0 %v132
    %134 = vmatprep.subr.mxu0 0.0
    %v135 = vand.u32 %v87, 4294901760
    %136 = vmatpush1.xpose.msra.mxu0 %v135
    %137 = vmatprep.subr.mxu0 0.0
    %v138 = vand.u32 %v90, 4294901760
    %139 = vmatpush1.xpose.msra.mxu0 %v138
    %140 = vmatprep.subr.mxu0 0.0
    %v141 = vand.u32 %v93, 4294901760
    %142 = vmatpush1.xpose.msra.mxu0 %v141
    %143 = vmatprep.subr.mxu0 0.0
    %v144 = vand.u32 %v96, 4294901760
    %145 = vmatpush1.xpose.msra.mxu0 %v144
    %146 = vmatprep.subr.mxu0 0.0
    %v147 = vand.u32 %v99, 4294901760
    %148 = vmatpush1.xpose.msra.mxu0 %v147
    %149 = vmatprep.subr.mxu0 0.0
    %v150 = vand.u32 %v102, 4294901760
    %151 = vmatpush1.xpose.msra.mxu0 %v150
    %152 = vmatprep.subr.mxu0 0.0
    %153 = vmatpush1.xpose.msra.mxu0 0.0
    %154 = vmatprep.subr.mxu0 0.0
    %155 = vmatpush1.xpose.msra.mxu0 0.0
    %156 = vmatprep.subr.mxu0 0.0
    %157 = vmatpush1.xpose.msra.mxu0 0.0
    %158 = vmatprep.subr.mxu0 0.0
    %159 = vmatpush1.xpose.msra.mxu0 0.0
    %160 = vmatprep.subr.mxu0 0.0
    %161 = vmatpush1.xpose.msra.mxu0 0.0
    %162 = vmatprep.subr.mxu0 0.0
    %163 = vmatpush1.xpose.msra.mxu0 0.0
    %164 = vmatprep.subr.mxu0 0.0
    %165 = vmatpush1.xpose.msra.mxu0 0.0
    %166 = vmatprep.subr.mxu0 0.0
    %167 = vmatpush1.xpose.msra.mxu0 0.0
    %168 = vmatprep.subr.mxu0 0.0
    %169 = vmatpush1.xpose.msra.mxu0 0.0
    %170 = vmatprep.subr.mxu0 0.0
    %171 = vmatpush1.xpose.msra.mxu0 0.0
    %172 = vmatprep.subr.mxu0 0.0
    %173 = vmatpush1.xpose.msra.mxu0 0.0
    %174 = vmatprep.subr.mxu0 0.0
    %175 = vmatpush1.xpose.msra.mxu0 0.0
    %176 = vmatprep.subr.mxu0 0.0
    %177 = vmatpush1.xpose.msra.mxu0 0.0
    %178 = vmatprep.subr.mxu0 0.0
    %179 = vmatpush1.xpose.msra.mxu0 0.0
    %180 = vmatprep.subr.mxu0 0.0
    %181 = vmatpush1.xpose.msra.mxu0 0.0
    %182 = vmatprep.subr.mxu0 0.0
    %183 = vmatpush1.xpose.msra.mxu0 0.0
    %184 = vmatprep.mubr.f32.mxu0 0.0
    %v185 = vand.u32 %v54, 4294901760
    %v186 = vsub.f32 %v54, %v185
    %v187 = vand.u32 %v186, 4294901760
    %v188 = vsub.f32 %v186, %v187
    %v189 = vand.u32 %v188, 4294901760
    %190 = vmatmul.mubr.f32.gmra.mrb[0].mxu0 %v189
    %v191 = vpop.f32.mrb[0].mxu0
    %v192 = vadd.f32 %v50, %v191
    %v193 = vpop.f32.mrb[0].mxu0
    %194 = vdwg.mxu0
    %195 = vmatprep.subr.mxu0 0.0
    %v196 = vand.u32 %v57, 4294901760
    %v197 = vsub.f32 %v57, %v196
    %v198 = vand.u32 %v197, 4294901760
    %v199 = vsub.f32 %v197, %v198
    %v200 = vand.u32 %v199, 4294901760
    %201 = vmatpush1.xpose.msra.mxu0 %v200
    %202 = vmatprep.subr.mxu0 0.0
    %v203 = vand.u32 %v60, 4294901760
    %v204 = vsub.f32 %v60, %v203
    %v205 = vand.u32 %v204, 4294901760
    %v206 = vsub.f32 %v204, %v205
    %v207 = vand.u32 %v206, 4294901760
    %208 = vmatpush1.xpose.msra.mxu0 %v207
    %209 = vmatprep.subr.mxu0 0.0
    %v210 = vand.u32 %v63, 4294901760
    %v211 = vsub.f32 %v63, %v210
    %v212 = vand.u32 %v211, 4294901760
    %v213 = vsub.f32 %v211, %v212
    %v214 = vand.u32 %v213, 4294901760
    %215 = vmatpush1.xpose.msra.mxu0 %v214
    %216 = vmatprep.subr.mxu0 0.0
    %v217 = vand.u32 %v66, 4294901760
    %v218 = vsub.f32 %v66, %v217
    %v219 = vand.u32 %v218, 4294901760
    %v220 = vsub.f32 %v218, %v219
    %v221 = vand.u32 %v220, 4294901760
    %222 = vmatpush1.xpose.msra.mxu0 %v221
    %223 = vmatprep.subr.mxu0 0.0
    %v224 = vand.u32 %v69, 4294901760
    %v225 = vsub.f32 %v69, %v224
    %v226 = vand.u32 %v225, 4294901760
    %v227 = vsub.f32 %v225, %v226
    %v228 = vand.u32 %v227, 4294901760
    %229 = vmatpush1.xpose.msra.mxu0 %v228
    %230 = vmatprep.subr.mxu0 0.0
    %v231 = vand.u32 %v72, 4294901760
    %v232 = vsub.f32 %v72, %v231
    %v233 = vand.u32 %v232, 4294901760
    %v234 = vsub.f32 %v232, %v233
    %v235 = vand.u32 %v234, 4294901760
    %236 = vmatpush1.xpose.msra.mxu0 %v235
    %237 = vmatprep.subr.mxu0 0.0
    %v238 = vand.u32 %v75, 4294901760
    %v239 = vsub.f32 %v75, %v238
    %v240 = vand.u32 %v239, 4294901760
    %v241 = vsub.f32 %v239, %v240
    %v242 = vand.u32 %v241, 4294901760
    %243 = vmatpush1.xpose.msra.mxu0 %v242
    %244 = vmatprep.subr.mxu0 0.0
    %v245 = vand.u32 %v78, 4294901760
    %v246 = vsub.f32 %v78, %v245
    %v247 = vand.u32 %v246, 4294901760
    %v248 = vsub.f32 %v246, %v247
    %v249 = vand.u32 %v248, 4294901760
    %250 = vmatpush1.xpose.msra.mxu0 %v249
    %251 = vmatprep.subr.mxu0 0.0
    %v252 = vand.u32 %v81, 4294901760
    %v253 = vsub.f32 %v81, %v252
    %v254 = vand.u32 %v253, 4294901760
    %v255 = vsub.f32 %v253, %v254
    %v256 = vand.u32 %v255, 4294901760
    %257 = vmatpush1.xpose.msra.mxu0 %v256
    %258 = vmatprep.subr.mxu0 0.0
    %v259 = vand.u32 %v84, 4294901760
    %v260 = vsub.f32 %v84, %v259
    %v261 = vand.u32 %v260, 4294901760
    %v262 = vsub.f32 %v260, %v261
    %v263 = vand.u32 %v262, 4294901760
    %264 = vmatpush1.xpose.msra.mxu0 %v263
    %265 = vmatprep.subr.mxu0 0.0
    %v266 = vand.u32 %v87, 4294901760
    %v267 = vsub.f32 %v87, %v266
    %v268 = vand.u32 %v267, 4294901760
    %v269 = vsub.f32 %v267, %v268
    %v270 = vand.u32 %v269, 4294901760
    %271 = vmatpush1.xpose.msra.mxu0 %v270
    %272 = vmatprep.subr.mxu0 0.0
    %v273 = vand.u32 %v90, 4294901760
    %v274 = vsub.f32 %v90, %v273
    %v275 = vand.u32 %v274, 4294901760
    %v276 = vsub.f32 %v274, %v275
    %v277 = vand.u32 %v276, 4294901760
    %278 = vmatpush1.xpose.msra.mxu0 %v277
    %279 = vmatprep.subr.mxu0 0.0
    %v280 = vand.u32 %v93, 4294901760
    %v281 = vsub.f32 %v93, %v280
    %v282 = vand.u32 %v281, 4294901760
    %v283 = vsub.f32 %v281, %v282
    %v284 = vand.u32 %v283, 4294901760
    %285 = vmatpush1.xpose.msra.mxu0 %v284
    %286 = vmatprep.subr.mxu0 0.0
    %v287 = vand.u32 %v96, 4294901760
    %v288 = vsub.f32 %v96, %v287
    %v289 = vand.u32 %v288, 4294901760
    %v290 = vsub.f32 %v288, %v289
    %v291 = vand.u32 %v290, 4294901760
    %292 = vmatpush1.xpose.msra.mxu0 %v291
    %293 = vmatprep.subr.mxu0 0.0
    %v294 = vand.u32 %v99, 4294901760
    %v295 = vsub.f32 %v99, %v294
    %v296 = vand.u32 %v295, 4294901760
    %v297 = vsub.f32 %v295, %v296
    %v298 = vand.u32 %v297, 4294901760
    %299 = vmatpush1.xpose.msra.mxu0 %v298
    %300 = vmatprep.subr.mxu0 0.0
    %v301 = vand.u32 %v102, 4294901760
    %v302 = vsub.f32 %v102, %v301
    %v303 = vand.u32 %v302, 4294901760
    %v304 = vsub.f32 %v302, %v303
    %v305 = vand.u32 %v304, 4294901760
    %306 = vmatpush1.xpose.msra.mxu0 %v305
    %307 = vmatprep.subr.mxu0 0.0
    %308 = vmatpush1.xpose.msra.mxu0 0.0
    %309 = vmatprep.subr.mxu0 0.0
    %310 = vmatpush1.xpose.msra.mxu0 0.0
    %311 = vmatprep.subr.mxu0 0.0
    %312 = vmatpush1.xpose.msra.mxu0 0.0
    %313 = vmatprep.subr.mxu0 0.0
    %314 = vmatpush1.xpose.msra.mxu0 0.0
    %315 = vmatprep.subr.mxu0 0.0
    %316 = vmatpush1.xpose.msra.mxu0 0.0
    %317 = vmatprep.subr.mxu0 0.0
    %318 = vmatpush1.xpose.msra.mxu0 0.0
    %319 = vmatprep.subr.mxu0 0.0
    %320 = vmatpush1.xpose.msra.mxu0 0.0
    %321 = vmatprep.subr.mxu0 0.0
    %322 = vmatpush1.xpose.msra.mxu0 0.0
    %323 = vmatprep.subr.mxu0 0.0
    %324 = vmatpush1.xpose.msra.mxu0 0.0
    %325 = vmatprep.subr.mxu0 0.0
    %326 = vmatpush1.xpose.msra.mxu0 0.0
    %327 = vmatprep.subr.mxu0 0.0
    %328 = vmatpush1.xpose.msra.mxu0 0.0
    %329 = vmatprep.subr.mxu0 0.0
    %330 = vmatpush1.xpose.msra.mxu0 0.0
    %331 = vmatprep.subr.mxu0 0.0
    %332 = vmatpush1.xpose.msra.mxu0 0.0
    %333 = vmatprep.subr.mxu0 0.0
    %334 = vmatpush1.xpose.msra.mxu0 0.0
    %335 = vmatprep.subr.mxu0 0.0
    %336 = vmatpush1.xpose.msra.mxu0 0.0
    %337 = vmatprep.subr.mxu0 0.0
    %338 = vmatpush1.xpose.msra.mxu0 0.0
    %339 = vmatprep.mubr.f32.mxu0 0.0
    %v340 = vand.u32 %v54, 4294901760
    %341 = vmatmul.mubr.f32.gmra.mrb[0].mxu0 %v340
    %v342 = vpop.f32.mrb[0].mxu0
    %v343 = vadd.f32 %v192, %v342
    %v344 = vpop.f32.mrb[0].mxu0
    %345 = vdwg.mxu0
    %346 = vmatprep.subr.mxu0 0.0
    %v347 = vand.u32 %v57, 4294901760
    %v348 = vsub.f32 %v57, %v347
    %349 = vmatpush1.xpose.msra.mxu0 %v348
    %350 = vmatprep.subr.mxu0 0.0
    %v351 = vand.u32 %v60, 4294901760
    %v352 = vsub.f32 %v60, %v351
    %353 = vmatpush1.xpose.msra.mxu0 %v352
    %354 = vmatprep.subr.mxu0 0.0
    %v355 = vand.u32 %v63, 4294901760
    %v356 = vsub.f32 %v63, %v355
    %357 = vmatpush1.xpose.msra.mxu0 %v356
    %358 = vmatprep.subr.mxu0 0.0
    %v359 = vand.u32 %v66, 4294901760
    %v360 = vsub.f32 %v66, %v359
    %361 = vmatpush1.xpose.msra.mxu0 %v360
    %362 = vmatprep.subr.mxu0 0.0
    %v363 = vand.u32 %v69, 4294901760
    %v364 = vsub.f32 %v69, %v363
    %365 = vmatpush1.xpose.msra.mxu0 %v364
    %366 = vmatprep.subr.mxu0 0.0
    %v367 = vand.u32 %v72, 4294901760
    %v368 = vsub.f32 %v72, %v367
    %369 = vmatpush1.xpose.msra.mxu0 %v368
    %370 = vmatprep.subr.mxu0 0.0
    %v371 = vand.u32 %v75, 4294901760
    %v372 = vsub.f32 %v75, %v371
    %373 = vmatpush1.xpose.msra.mxu0 %v372
    %374 = vmatprep.subr.mxu0 0.0
    %v375 = vand.u32 %v78, 4294901760
    %v376 = vsub.f32 %v78, %v375
    %377 = vmatpush1.xpose.msra.mxu0 %v376
    %378 = vmatprep.subr.mxu0 0.0
    %v379 = vand.u32 %v81, 4294901760
    %v380 = vsub.f32 %v81, %v379
    %381 = vmatpush1.xpose.msra.mxu0 %v380
    %382 = vmatprep.subr.mxu0 0.0
    %v383 = vand.u32 %v84, 4294901760
    %v384 = vsub.f32 %v84, %v383
    %385 = vmatpush1.xpose.msra.mxu0 %v384
    %386 = vmatprep.subr.mxu0 0.0
    %v387 = vand.u32 %v87, 4294901760
    %v388 = vsub.f32 %v87, %v387
    %389 = vmatpush1.xpose.msra.mxu0 %v388
    %390 = vmatprep.subr.mxu0 0.0
    %v391 = vand.u32 %v90, 4294901760
    %v392 = vsub.f32 %v90, %v391
    %393 = vmatpush1.xpose.msra.mxu0 %v392
    %394 = vmatprep.subr.mxu0 0.0
    %v395 = vand.u32 %v93, 4294901760
    %v396 = vsub.f32 %v93, %v395
    %397 = vmatpush1.xpose.msra.mxu0 %v396
    %398 = vmatprep.subr.mxu0 0.0
    %v399 = vand.u32 %v96, 4294901760
    %v400 = vsub.f32 %v96, %v399
    %401 = vmatpush1.xpose.msra.mxu0 %v400
    %402 = vmatprep.subr.mxu0 0.0
    %v403 = vand.u32 %v99, 4294901760
    %v404 = vsub.f32 %v99, %v403
    %405 = vmatpush1.xpose.msra.mxu0 %v404
    %406 = vmatprep.subr.mxu0 0.0
    %v407 = vand.u32 %v102, 4294901760
    %v408 = vsub.f32 %v102, %v407
    %409 = vmatpush1.xpose.msra.mxu0 %v408
    %410 = vmatprep.subr.mxu0 0.0
    %411 = vmatpush1.xpose.msra.mxu0 0.0
    %412 = vmatprep.subr.mxu0 0.0
    %413 = vmatpush1.xpose.msra.mxu0 0.0
    %414 = vmatprep.subr.mxu0 0.0
    %415 = vmatpush1.xpose.msra.mxu0 0.0
    %416 = vmatprep.subr.mxu0 0.0
    %417 = vmatpush1.xpose.msra.mxu0 0.0
    %418 = vmatprep.subr.mxu0 0.0
    %419 = vmatpush1.xpose.msra.mxu0 0.0
    %420 = vmatprep.subr.mxu0 0.0
    %421 = vmatpush1.xpose.msra.mxu0 0.0
    %422 = vmatprep.subr.mxu0 0.0
    %423 = vmatpush1.xpose.msra.mxu0 0.0
    %424 = vmatprep.subr.mxu0 0.0
    %425 = vmatpush1.xpose.msra.mxu0 0.0
    %426 = vmatprep.subr.mxu0 0.0
    %427 = vmatpush1.xpose.msra.mxu0 0.0
    %428 = vmatprep.subr.mxu0 0.0
    %429 = vmatpush1.xpose.msra.mxu0 0.0
    %430 = vmatprep.subr.mxu0 0.0
    %431 = vmatpush1.xpose.msra.mxu0 0.0
    %432 = vmatprep.subr.mxu0 0.0
    %433 = vmatpush1.xpose.msra.mxu0 0.0
    %434 = vmatprep.subr.mxu0 0.0
    %435 = vmatpush1.xpose.msra.mxu0 0.0
    %436 = vmatprep.subr.mxu0 0.0
    %437 = vmatpush1.xpose.msra.mxu0 0.0
    %438 = vmatprep.subr.mxu0 0.0
    %439 = vmatpush1.xpose.msra.mxu0 0.0
    %440 = vmatprep.subr.mxu0 0.0
    %441 = vmatpush1.xpose.msra.mxu0 0.0
    %442 = vmatprep.mubr.f32.mxu0 0.0
    %v443 = vand.u32 %v54, 4294901760
    %v444 = vsub.f32 %v54, %v443
    %445 = vmatmul.mubr.f32.gmra.mrb[0].mxu0 %v444
    %v446 = vpop.f32.mrb[0].mxu0
    %v447 = vadd.f32 %v343, %v446
    %v448 = vpop.f32.mrb[0].mxu0
    %449 = vdwg.mxu0
    %450 = vmatprep.subr.mxu0 0.0
    %v451 = vand.u32 %v57, 4294901760
    %452 = vmatpush1.xpose.msra.mxu0 %v451
    %453 = vmatprep.subr.mxu0 0.0
    %v454 = vand.u32 %v60, 4294901760
    %455 = vmatpush1.xpose.msra.mxu0 %v454
    %456 = vmatprep.subr.mxu0 0.0
    %v457 = vand.u32 %v63, 4294901760
    %458 = vmatpush1.xpose.msra.mxu0 %v457
    %459 = vmatprep.subr.mxu0 0.0
    %v460 = vand.u32 %v66, 4294901760
    %461 = vmatpush1.xpose.msra.mxu0 %v460
    %462 = vmatprep.subr.mxu0 0.0
    %v463 = vand.u32 %v69, 4294901760
    %464 = vmatpush1.xpose.msra.mxu0 %v463
    %465 = vmatprep.subr.mxu0 0.0
    %v466 = vand.u32 %v72, 4294901760
    %467 = vmatpush1.xpose.msra.mxu0 %v466
    %468 = vmatprep.subr.mxu0 0.0
    %v469 = vand.u32 %v75, 4294901760
    %470 = vmatpush1.xpose.msra.mxu0 %v469
    %471 = vmatprep.subr.mxu0 0.0
    %v472 = vand.u32 %v78, 4294901760
    %473 = vmatpush1.xpose.msra.mxu0 %v472
    %474 = vmatprep.subr.mxu0 0.0
    %v475 = vand.u32 %v81, 4294901760
    %476 = vmatpush1.xpose.msra.mxu0 %v475
    %477 = vmatprep.subr.mxu0 0.0
    %v478 = vand.u32 %v84, 4294901760
    %479 = vmatpush1.xpose.msra.mxu0 %v478
    %480 = vmatprep.subr.mxu0 0.0
    %v481 = vand.u32 %v87, 4294901760
    %482 = vmatpush1.xpose.msra.mxu0 %v481
    %483 = vmatprep.subr.mxu0 0.0
    %v484 = vand.u32 %v90, 4294901760
    %485 = vmatpush1.xpose.msra.mxu0 %v484
    %486 = vmatprep.subr.mxu0 0.0
    %v487 = vand.u32 %v93, 4294901760
    %488 = vmatpush1.xpose.msra.mxu0 %v487
    %489 = vmatprep.subr.mxu0 0.0
    %v490 = vand.u32 %v96, 4294901760
    %491 = vmatpush1.xpose.msra.mxu0 %v490
    %492 = vmatprep.subr.mxu0 0.0
    %v493 = vand.u32 %v99, 4294901760
    %494 = vmatpush1.xpose.msra.mxu0 %v493
    %495 = vmatprep.subr.mxu0 0.0
    %v496 = vand.u32 %v102, 4294901760
    %497 = vmatpush1.xpose.msra.mxu0 %v496
    %498 = vmatprep.subr.mxu0 0.0
    %499 = vmatpush1.xpose.msra.mxu0 0.0
    %500 = vmatprep.subr.mxu0 0.0
    %501 = vmatpush1.xpose.msra.mxu0 0.0
    %502 = vmatprep.subr.mxu0 0.0
    %503 = vmatpush1.xpose.msra.mxu0 0.0
    %504 = vmatprep.subr.mxu0 0.0
    %505 = vmatpush1.xpose.msra.mxu0 0.0
    %506 = vmatprep.subr.mxu0 0.0
    %507 = vmatpush1.xpose.msra.mxu0 0.0
    %508 = vmatprep.subr.mxu0 0.0
    %509 = vmatpush1.xpose.msra.mxu0 0.0
    %510 = vmatprep.subr.mxu0 0.0
    %511 = vmatpush1.xpose.msra.mxu0 0.0
    %512 = vmatprep.subr.mxu0 0.0
    %513 = vmatpush1.xpose.msra.mxu0 0.0
    %514 = vmatprep.subr.mxu0 0.0
    %515 = vmatpush1.xpose.msra.mxu0 0.0
    %516 = vmatprep.subr.mxu0 0.0
    %517 = vmatpush1.xpose.msra.mxu0 0.0
    %518 = vmatprep.subr.mxu0 0.0
    %519 = vmatpush1.xpose.msra.mxu0 0.0
    %520 = vmatprep.subr.mxu0 0.0
    %521 = vmatpush1.xpose.msra.mxu0 0.0
    %522 = vmatprep.subr.mxu0 0.0
    %523 = vmatpush1.xpose.msra.mxu0 0.0
    %524 = vmatprep.subr.mxu0 0.0
    %525 = vmatpush1.xpose.msra.mxu0 0.0
    %526 = vmatprep.subr.mxu0 0.0
    %527 = vmatpush1.xpose.msra.mxu0 0.0
    %528 = vmatprep.subr.mxu0 0.0
    %529 = vmatpush1.xpose.msra.mxu0 0.0
    %530 = vmatprep.mubr.f32.mxu0 0.0
    %v531 = vand.u32 %v54, 4294901760
    %v532 = vsub.f32 %v54, %v531
    %v533 = vand.u32 %v532, 4294901760
    %534 = vmatmul.mubr.f32.gmra.mrb[0].mxu0 %v533
    %v535 = vpop.f32.mrb[0].mxu0
    %v536 = vadd.f32 %v447, %v535
    %v537 = vpop.f32.mrb[0].mxu0
    %538 = vdwg.mxu0
    %539 = vmatprep.subr.mxu0 0.0
    %v540 = vand.u32 %v57, 4294901760
    %v541 = vsub.f32 %v57, %v540
    %v542 = vand.u32 %v541, 4294901760
    %543 = vmatpush1.xpose.msra.mxu0 %v542
    %544 = vmatprep.subr.mxu0 0.0
    %v545 = vand.u32 %v60, 4294901760
    %v546 = vsub.f32 %v60, %v545
    %v547 = vand.u32 %v546, 4294901760
    %548 = vmatpush1.xpose.msra.mxu0 %v547
    %549 = vmatprep.subr.mxu0 0.0
    %v550 = vand.u32 %v63, 4294901760
    %v551 = vsub.f32 %v63, %v550
    %v552 = vand.u32 %v551, 4294901760
    %553 = vmatpush1.xpose.msra.mxu0 %v552
    %554 = vmatprep.subr.mxu0 0.0
    %v555 = vand.u32 %v66, 4294901760
    %v556 = vsub.f32 %v66, %v555
    %v557 = vand.u32 %v556, 4294901760
    %558 = vmatpush1.xpose.msra.mxu0 %v557
    %559 = vmatprep.subr.mxu0 0.0
    %v560 = vand.u32 %v69, 4294901760
    %v561 = vsub.f32 %v69, %v560
    %v562 = vand.u32 %v561, 4294901760
    %563 = vmatpush1.xpose.msra.mxu0 %v562
    %564 = vmatprep.subr.mxu0 0.0
    %v565 = vand.u32 %v72, 4294901760
    %v566 = vsub.f32 %v72, %v565
    %v567 = vand.u32 %v566, 4294901760
    %568 = vmatpush1.xpose.msra.mxu0 %v567
    %569 = vmatprep.subr.mxu0 0.0
    %v570 = vand.u32 %v75, 4294901760
    %v571 = vsub.f32 %v75, %v570
    %v572 = vand.u32 %v571, 4294901760
    %573 = vmatpush1.xpose.msra.mxu0 %v572
    %574 = vmatprep.subr.mxu0 0.0
    %v575 = vand.u32 %v78, 4294901760
    %v576 = vsub.f32 %v78, %v575
    %v577 = vand.u32 %v576, 4294901760
    %578 = vmatpush1.xpose.msra.mxu0 %v577
    %579 = vmatprep.subr.mxu0 0.0
    %v580 = vand.u32 %v81, 4294901760
    %v581 = vsub.f32 %v81, %v580
    %v582 = vand.u32 %v581, 4294901760
    %583 = vmatpush1.xpose.msra.mxu0 %v582
    %584 = vmatprep.subr.mxu0 0.0
    %v585 = vand.u32 %v84, 4294901760
    %v586 = vsub.f32 %v84, %v585
    %v587 = vand.u32 %v586, 4294901760
    %588 = vmatpush1.xpose.msra.mxu0 %v587
    %589 = vmatprep.subr.mxu0 0.0
    %v590 = vand.u32 %v87, 4294901760
    %v591 = vsub.f32 %v87, %v590
    %v592 = vand.u32 %v591, 4294901760
    %593 = vmatpush1.xpose.msra.mxu0 %v592
    %594 = vmatprep.subr.mxu0 0.0
    %v595 = vand.u32 %v90, 4294901760
    %v596 = vsub.f32 %v90, %v595
    %v597 = vand.u32 %v596, 4294901760
    %598 = vmatpush1.xpose.msra.mxu0 %v597
    %599 = vmatprep.subr.mxu0 0.0
    %v600 = vand.u32 %v93, 4294901760
    %v601 = vsub.f32 %v93, %v600
    %v602 = vand.u32 %v601, 4294901760
    %603 = vmatpush1.xpose.msra.mxu0 %v602
    %604 = vmatprep.subr.mxu0 0.0
    %v605 = vand.u32 %v96, 4294901760
    %v606 = vsub.f32 %v96, %v605
    %v607 = vand.u32 %v606, 4294901760
    %608 = vmatpush1.xpose.msra.mxu0 %v607
    %609 = vmatprep.subr.mxu0 0.0
    %v610 = vand.u32 %v99, 4294901760
    %v611 = vsub.f32 %v99, %v610
    %v612 = vand.u32 %v611, 4294901760
    %613 = vmatpush1.xpose.msra.mxu0 %v612
    %614 = vmatprep.subr.mxu0 0.0
    %v615 = vand.u32 %v102, 4294901760
    %v616 = vsub.f32 %v102, %v615
    %v617 = vand.u32 %v616, 4294901760
    %618 = vmatpush1.xpose.msra.mxu0 %v617
    %619 = vmatprep.subr.mxu0 0.0
    %620 = vmatpush1.xpose.msra.mxu0 0.0
    %621 = vmatprep.subr.mxu0 0.0
    %622 = vmatpush1.xpose.msra.mxu0 0.0
    %623 = vmatprep.subr.mxu0 0.0
    %624 = vmatpush1.xpose.msra.mxu0 0.0
    %625 = vmatprep.subr.mxu0 0.0
    %626 = vmatpush1.xpose.msra.mxu0 0.0
    %627 = vmatprep.subr.mxu0 0.0
    %628 = vmatpush1.xpose.msra.mxu0 0.0
    %629 = vmatprep.subr.mxu0 0.0
    %630 = vmatpush1.xpose.msra.mxu0 0.0
    %631 = vmatprep.subr.mxu0 0.0
    %632 = vmatpush1.xpose.msra.mxu0 0.0
    %633 = vmatprep.subr.mxu0 0.0
    %634 = vmatpush1.xpose.msra.mxu0 0.0
    %635 = vmatprep.subr.mxu0 0.0
    %636 = vmatpush1.xpose.msra.mxu0 0.0
    %637 = vmatprep.subr.mxu0 0.0
    %638 = vmatpush1.xpose.msra.mxu0 0.0
    %639 = vmatprep.subr.mxu0 0.0
    %640 = vmatpush1.xpose.msra.mxu0 0.0
    %641 = vmatprep.subr.mxu0 0.0
    %642 = vmatpush1.xpose.msra.mxu0 0.0
    %643 = vmatprep.subr.mxu0 0.0
    %644 = vmatpush1.xpose.msra.mxu0 0.0
    %645 = vmatprep.subr.mxu0 0.0
    %646 = vmatpush1.xpose.msra.mxu0 0.0
    %647 = vmatprep.subr.mxu0 0.0
    %648 = vmatpush1.xpose.msra.mxu0 0.0
    %649 = vmatprep.subr.mxu0 0.0
    %650 = vmatpush1.xpose.msra.mxu0 0.0
    %651 = vmatprep.mubr.f32.mxu0 0.0
    %v652 = vand.u32 %v54, 4294901760
    %653 = vmatmul.mubr.f32.gmra.mrb[0].mxu0 %v652
    %v654 = vpop.f32.mrb[0].mxu0
    %v655 = vadd.f32 %v536, %v654
    %v656 = vpop.f32.mrb[0].mxu0
    %657 = vdwg.mxu0
    %658 = vmatprep.subr.mxu0 0.0
    %v659 = vand.u32 %v57, 4294901760
    %660 = vmatpush1.xpose.msra.mxu0 %v659
    %661 = vmatprep.subr.mxu0 0.0
    %v662 = vand.u32 %v60, 4294901760
    %663 = vmatpush1.xpose.msra.mxu0 %v662
    %664 = vmatprep.subr.mxu0 0.0
    %v665 = vand.u32 %v63, 4294901760
    %666 = vmatpush1.xpose.msra.mxu0 %v665
    %667 = vmatprep.subr.mxu0 0.0
    %v668 = vand.u32 %v66, 4294901760
    %669 = vmatpush1.xpose.msra.mxu0 %v668
    %670 = vmatprep.subr.mxu0 0.0
    %v671 = vand.u32 %v69, 4294901760
    %672 = vmatpush1.xpose.msra.mxu0 %v671
    %673 = vmatprep.subr.mxu0 0.0
    %v674 = vand.u32 %v72, 4294901760
    %675 = vmatpush1.xpose.msra.mxu0 %v674
    %676 = vmatprep.subr.mxu0 0.0
    %v677 = vand.u32 %v75, 4294901760
    %678 = vmatpush1.xpose.msra.mxu0 %v677
    %679 = vmatprep.subr.mxu0 0.0
    %v680 = vand.u32 %v78, 4294901760
    %681 = vmatpush1.xpose.msra.mxu0 %v680
    %682 = vmatprep.subr.mxu0 0.0
    %v683 = vand.u32 %v81, 4294901760
    %684 = vmatpush1.xpose.msra.mxu0 %v683
    %685 = vmatprep.subr.mxu0 0.0
    %v686 = vand.u32 %v84, 4294901760
    %687 = vmatpush1.xpose.msra.mxu0 %v686
    %688 = vmatprep.subr.mxu0 0.0
    %v689 = vand.u32 %v87, 4294901760
    %690 = vmatpush1.xpose.msra.mxu0 %v689
    %691 = vmatprep.subr.mxu0 0.0
    %v692 = vand.u32 %v90, 4294901760
    %693 = vmatpush1.xpose.msra.mxu0 %v692
    %694 = vmatprep.subr.mxu0 0.0
    %v695 = vand.u32 %v93, 4294901760
    %696 = vmatpush1.xpose.msra.mxu0 %v695
    %697 = vmatprep.subr.mxu0 0.0
    %v698 = vand.u32 %v96, 4294901760
    %699 = vmatpush1.xpose.msra.mxu0 %v698
    %700 = vmatprep.subr.mxu0 0.0
    %v701 = vand.u32 %v99, 4294901760
    %702 = vmatpush1.xpose.msra.mxu0 %v701
    %703 = vmatprep.subr.mxu0 0.0
    %v704 = vand.u32 %v102, 4294901760
    %705 = vmatpush1.xpose.msra.mxu0 %v704
    %706 = vmatprep.subr.mxu0 0.0
    %707 = vmatpush1.xpose.msra.mxu0 0.0
    %708 = vmatprep.subr.mxu0 0.0
    %709 = vmatpush1.xpose.msra.mxu0 0.0
    %710 = vmatprep.subr.mxu0 0.0
    %711 = vmatpush1.xpose.msra.mxu0 0.0
    %712 = vmatprep.subr.mxu0 0.0
    %713 = vmatpush1.xpose.msra.mxu0 0.0
    %714 = vmatprep.subr.mxu0 0.0
    %715 = vmatpush1.xpose.msra.mxu0 0.0
    %716 = vmatprep.subr.mxu0 0.0
    %717 = vmatpush1.xpose.msra.mxu0 0.0
    %718 = vmatprep.subr.mxu0 0.0
    %719 = vmatpush1.xpose.msra.mxu0 0.0
    %720 = vmatprep.subr.mxu0 0.0
    %721 = vmatpush1.xpose.msra.mxu0 0.0
    %722 = vmatprep.subr.mxu0 0.0
    %723 = vmatpush1.xpose.msra.mxu0 0.0
    %724 = vmatprep.subr.mxu0 0.0
    %725 = vmatpush1.xpose.msra.mxu0 0.0
    %726 = vmatprep.subr.mxu0 0.0
    %727 = vmatpush1.xpose.msra.mxu0 0.0
    %728 = vmatprep.subr.mxu0 0.0
    %729 = vmatpush1.xpose.msra.mxu0 0.0
    %730 = vmatprep.subr.mxu0 0.0
    %731 = vmatpush1.xpose.msra.mxu0 0.0
    %732 = vmatprep.subr.mxu0 0.0
    %733 = vmatpush1.xpose.msra.mxu0 0.0
    %734 = vmatprep.subr.mxu0 0.0
    %735 = vmatpush1.xpose.msra.mxu0 0.0
    %736 = vmatprep.subr.mxu0 0.0
    %737 = vmatpush1.xpose.msra.mxu0 0.0
    %738 = vmatprep.mubr.f32.mxu0 0.0
    %v739 = vand.u32 %v54, 4294901760
    %740 = vmatmul.mubr.f32.gmra.mrb[0].mxu0 %v739
    %v741 = vpop.f32.mrb[0].mxu0
    %v742 = vadd.f32 %v655, %v741
    %v743 = vpop.f32.mrb[0].mxu0
    %744 = vdwg.mxu0
    %745 = vst [vmem:[#allocation5] sm:$0x7] %v742
    // Predicated region
    $region18: #{tpu_custom_call.1} parent=1 // pred_check
      _
    $region19: #{tpu_custom_call.1} parent=1 // pred_check_branch
      %747 = sbr.rel (0) target = $region21
    $region20: #{tpu_custom_call.1} parent=1 // pred_region
      %s749 = ssub.s32 64, 64
      %750 = vsyncadd [#allocation4], %s749
      %s752 = sshll.u32 [#allocation5], 4
      %s753 = int_to_ptr.vmem [resolvable:$true] %s752
      %755 = dma.vmem_to_hbm [thread:$0]  %s753, 64, %s3, [#allocation4]
    $region21: #{tpu_custom_call.1} parent=1 // pred_fallthru
      _
    // Predicated region
    $region22: #{tpu_custom_call.1} parent=1 // pred_check
      _
    $region23: #{tpu_custom_call.1} parent=1 // pred_check_branch
      %757 = sbr.rel (0) target = $region25
    $region24: #{tpu_custom_call.1} parent=1 // pred_region
      %758 = dma.done [#allocation4], 64
    $region25: #{tpu_custom_call.1} parent=1 // pred_fallthru
      _
    %759 = vsyncpa [#allocation3], 1
    %760 = vsyncpa [#allocation4], 1

</llo_original>
